<compile_context>
chip_gen: v7x
topology: tpu7x:2x2x1
jax: 0.10.0
libtpu: 0.0.40
codegen_flags: <defaults>
</compile_context>

<pallas_src>
import functools

import jax
import jax.numpy as jnp
from jax.experimental import pallas as pl
from jax.experimental.pallas import tpu as pltpu


def _round_up(x, m):
    return (x + m - 1) // m * m


def _cdiv(a, b):
    return -(-a // b)


def _device_kind():
    try:
        return jax.devices()[0].device_kind.lower()
    except Exception:
        return ""


def _vmem_limit_bytes(kind):
    # 128 MiB physical on v5e/v6e -> raise scoped limit; 64 MiB on v7x ->
    # leave headroom; unknown / older chips -> keep compiler default.
    if "v5" in kind or "v6" in kind:
        return 64 * 1024 * 1024
    if "v7" in kind or "7x" in kind:
        return 48 * 1024 * 1024
    return None


def _choose_tm(m, kind):
    cap = 2048 if ("v5" in kind or "v6" in kind) else 1024
    if m <= 512:
        return _round_up(m, 16)
    # Target >= 8 grid steps (both v7x TensorCores + DMA/compute overlap),
    # tiles a multiple of 128, capped to amortize ~0.35us/step overhead
    # without blowing VMEM.
    return max(128, min(cap, _round_up(_cdiv(m, 8), 128)))


def _choose_lane_multiple(max_real_channels, kind):
    # v6e/v7x MXUs are 256 result-columns wide; only widen padding when the
    # real channel count already exceeds 128 (never inflate tiny channels).
    if max_real_channels > 128 and ("v6" in kind or "v7" in kind or "7x" in kind):
        return 256
    return 128


# ----------------------------------------------------------------------------
# Fused kernel: one M-tile of pixels through the whole encoder chain.
#   x_ref   : (TM, K0)            bf16  im2col patches (real K, no padding)
#   w0_ref  : (K0, CP)            bf16  conv0 weights (channel padded)
#   aff_ref : (L+3, CP)           f32   row 0        = conv0 bias
#                                       rows 1..L    = folded pointwise biases
#                                       row L+1/L+2  = last-layer BN scale/shift
#   wpw_ref : (L, CP, CP)         bf16  folded pointwise 1x1 weights
#   o_ref   : (TM, Cf)            f32   final activation tile (real channels)
# ----------------------------------------------------------------------------
def _encoder_chain_kernel(x_ref, w0_ref, aff_ref, wpw_ref, o_ref):
    num_pw = wpw_ref.shape[0]
    aff = aff_ref[...]                                       # (L+3, CP) f32

    # Layer 0: strided conv (GEMM over im2col patches) + bias + ReLU.
    z = jnp.dot(x_ref[...], w0_ref[...], preferred_element_type=jnp.float32)
    act = jnp.maximum(z + aff[0:1, :], 0.0).astype(jnp.bfloat16)

    # Pointwise 1x1 conv blocks; BN of layers 0..L-2 pre-folded into weights.
    for l in range(num_pw):                                  # static unroll
        z = jnp.dot(act, wpw_ref[l], preferred_element_type=jnp.float32)
        z = jnp.maximum(z + aff[l + 1:l + 2, :], 0.0)        # bias + ReLU (f32)
        if l < num_pw - 1:
            act = z.astype(jnp.bfloat16)                     # bf16 loop carry

    # Last layer's BatchNorm (eval mode) affine, then write only the real
    # channel lanes -- padded zero lanes never hit HBM.
    z = z * aff[num_pw + 1:num_pw + 2, :] + aff[num_pw + 2:num_pw + 3, :]
    o_ref[...] = z[:, :o_ref.shape[1]].astype(o_ref.dtype)


def _run_encoder_chain(patches, w0, aff, wpw, out_channels, *, tm, vmem_limit):
    m, k_real = patches.shape
    cpad = w0.shape[1]
    num_pw = wpw.shape[0]
    grid_m = _cdiv(m, tm)

    flops = 2 * m * cpad * (k_real + num_pw * cpad)
    bytes_accessed = (m * k_real * 2                       # bf16 patch stream
                      + m * out_channels * 4               # f32 output stream
                      + k_real * cpad * 2                  # conv0 weights
                      + num_pw * cpad * cpad * 2           # pointwise weights
                      + (num_pw + 3) * cpad * 4)           # affine params

    return pl.pallas_call(
        _encoder_chain_kernel,
        out_shape=jax.ShapeDtypeStruct((m, out_channels), jnp.float32),
        grid_spec=pltpu.PrefetchScalarGridSpec(
            num_scalar_prefetch=0,
            grid=(grid_m,),
            in_specs=[
                pl.BlockSpec((tm, k_real), lambda i: (i, 0)),
                pl.BlockSpec((k_real, cpad), lambda i: (0, 0)),
                pl.BlockSpec((num_pw + 3, cpad), lambda i: (0, 0)),
                pl.BlockSpec((num_pw, cpad, cpad), lambda i: (0, 0, 0)),
            ],
            out_specs=pl.BlockSpec((tm, out_channels), lambda i: (i, 0)),
        ),
        compiler_params=pltpu.CompilerParams(
            dimension_semantics=("parallel",),      # megacore sharding on v7x
            vmem_limit_bytes=vmem_limit,
        ),
        cost_estimate=pl.CostEstimate(
            flops=int(flops),
            transcendentals=0,
            bytes_accessed=int(bytes_accessed),
        ),
    )(patches, w0, aff, wpw)


# ----------------------------------------------------------------------------
# Glue: im2col for the strided kxk conv (plain JAX, static python loops).
# Patch flattening order matches PyTorch weight layout (C_out, C_in, kh, kw):
# flattened index = c * k * k + kh * k + kw.
# ----------------------------------------------------------------------------
def _im2col(x, k, s):
    n, c, h, w = x.shape
    ho = (h - k) // s + 1
    wo = (w - k) // s + 1
    cols = []
    for i in range(k):
        for j in range(k):
            cols.append(x[:, :, i:i + s * ho:s, j:j + s * wo:s])  # (n,c,ho,wo)
    p = jnp.stack(cols, axis=2)                  # (n, c, k*k, ho, wo)
    p = p.reshape(n, c * k * k, ho, wo)
    p = p.transpose(0, 2, 3, 1).reshape(n * ho * wo, c * k * k)
    return p, ho, wo


# ----------------------------------------------------------------------------
# Parameter construction (deterministic, PyTorch-like init magnitudes).
# ----------------------------------------------------------------------------
def make_params(key, kernel_size, hidden_layers, initial_channels,
                final_channels, input_channels):
    params = {}
    fan_in0 = input_channels * kernel_size * kernel_size
    bound0 = 1.0 / jnp.sqrt(fan_in0)
    kw, kb, key = jax.random.split(key, 3)
    params["conv0_w"] = jax.random.uniform(
        kw, (initial_channels, input_channels, kernel_size, kernel_size),
        jnp.float32, -bound0, bound0)
    params["conv0_b"] = jax.random.uniform(
        kb, (initial_channels,), jnp.float32, -bound0, bound0)

    pw_layers = []
    last = initial_channels
    for _ in range(hidden_layers + 1):
        kw, kb, kg, kbeta, km, kv, key = jax.random.split(key, 7)
        bound = 1.0 / jnp.sqrt(last)
        layer = {
            "w": jax.random.uniform(kw, (final_channels, last, 1, 1),
                                    jnp.float32, -bound, bound),
            "b": jax.random.uniform(kb, (final_channels,),
                                    jnp.float32, -bound, bound),
            # BatchNorm2d eval-mode parameters (deterministic synthetic values)
            "gamma": 1.0 + 0.1 * jax.random.normal(kg, (final_channels,),
                                                   jnp.float32),
            "beta": 0.1 * jax.random.normal(kbeta, (final_channels,),
                                            jnp.float32),
            "running_mean": 0.1 * jax.random.normal(km, (final_channels,),
                                                    jnp.float32),
            "running_var": 1.0 + 0.1 * jax.random.uniform(
                kv, (final_channels,), jnp.float32),
        }
        pw_layers.append(layer)
        last = final_channels
    params["pointwise"] = pw_layers
    return params


# ----------------------------------------------------------------------------
# Forward pass.
# ----------------------------------------------------------------------------
@functools.partial(jax.jit, static_argnames=("kernel_size",))
def conv_encoder_forward(x, params, *, kernel_size):
    eps = 1e-5
    n = x.shape[0]
    stride = kernel_size // 2
    kind = _device_kind()

    # --- im2col for the strided kxk conv, built directly in bf16 ------------
    patches, ho, wo = _im2col(x.astype(jnp.bfloat16), kernel_size, stride)
    m, k_real = patches.shape

    c0 = params["conv0_w"].shape[0]
    cf = params["pointwise"][-1]["w"].shape[0]
    num_pw = len(params["pointwise"])

    # Channel padding only (K kept at real size to avoid inflating the
    # dominant patch stream).
    lane_mult = _choose_lane_multiple(max(c0, cf), kind)
    cpad = _round_up(max(c0, cf), lane_mult)

    tm = _choose_tm(m, kind)
    vmem_limit = _vmem_limit_bytes(kind)

    # --- pack / pad weights, fold BatchNorm into following layers -----------
    w0 = params["conv0_w"].reshape(c0, k_real).T.astype(jnp.bfloat16)  # (K,C0)
    w0_p = jnp.pad(w0, ((0, 0), (0, cpad - c0)))

    bias_rows = [jnp.pad(params["conv0_b"].astype(jnp.float32),
                         (0, cpad - c0))]
    wpw_layers = []
    prev_s = None        # BN scale of previous pointwise layer (to fold)
    prev_t = None        # BN shift of previous pointwise layer (to fold)
    for layer in params["pointwise"]:
        cout, cin = layer["w"].shape[0], layer["w"].shape[1]
        w = layer["w"].reshape(cout, cin).T.astype(jnp.float32)   # (Cin, Cout)
        b = layer["b"].astype(jnp.float32)
        if prev_s is not None:
            b = b + prev_t @ w                 # shift folds through original W
            w = w * prev_s[:, None]            # scale folds into rows of W
        wpw_layers.append(jnp.pad(w.astype(jnp.bfloat16),
                                  ((0, cpad - cin), (0, cpad - cout))))
        bias_rows.append(jnp.pad(b, (0, cpad - cout)))
        inv_std = 1.0 / jnp.sqrt(layer["running_var"] + eps)
        prev_s = layer["gamma"] * inv_std
        prev_t = layer["beta"] - layer["running_mean"] * prev_s

    wpw = jnp.stack(wpw_layers, axis=0)                       # (L, CP, CP) bf16
    aff = jnp.stack(
        bias_rows
        + [jnp.pad(prev_s.astype(jnp.float32), (0, cpad - cf)),
           jnp.pad(prev_t.astype(jnp.float32), (0, cpad - cf))],
        axis=0).astype(jnp.float32)                           # (L+3, CP) f32

    # --- one fused Pallas kernel for the whole chain -------------------------
    y = _run_encoder_chain(patches, w0_p, aff, wpw, cf,
                           tm=tm, vmem_limit=vmem_limit)      # (M, Cf) f32

    # Back to NCHW to match PyTorch output layout (see TODO on transpose).
    out = y.reshape(n, ho, wo, cf).transpose(0, 3, 1, 2)      # (N, Cf, Ho, Wo)
    return out


if __name__ == "__main__":
    # Small, module-consistent shapes.
    kernel_size = 4          # -> stride = 2
    hidden_layers = 1        # -> 2 pointwise blocks
    initial_channels = 8
    final_channels = 16
    input_channels = 3
    N, H, W = 2, 16, 16      # Ho = Wo = (16 - 4)//2 + 1 = 7

    key = jax.random.PRNGKey(0)
    kx, kp = jax.random.split(key)
    x = jax.random.normal(kx, (N, input_channels, H, W), jnp.float32)
    params = make_params(kp, kernel_size, hidden_layers, initial_channels,
                         final_channels, input_channels)

    out = conv_encoder_forward(x, params, kernel_size=kernel_size)
    out = jax.block_until_ready(out)
    assert out.shape == (N, final_channels, 7, 7), out.shape
    assert bool(jnp.all(jnp.isfinite(out)))
    print("KERNEL_OK")
</pallas_src>

<mosaic_0001>
module attributes {stable_mosaic.version = 11 : i64} {
  func.func @_encoder_chain_kernel(%arg0: i32, %arg1: memref<112x48xbf16, #tpu.memory_space<vmem>>, %arg2: memref<48x128xbf16, #tpu.memory_space<vmem>>, %arg3: memref<5x128xf32, #tpu.memory_space<vmem>>, %arg4: memref<2x128x128xbf16, #tpu.memory_space<vmem>>, %arg5: memref<112x16xf32, #tpu.memory_space<vmem>>) attributes {dimension_semantics = [#tpu.dimension_semantics<parallel>], iteration_bounds = array<i64: 1>, scalar_prefetch = 0 : i64, scratch_operands = 0 : i64, tpu.core_type = #tpu.core_type<tc>, window_params = [{transform_indices = @transform_0, window_bounds = array<i64: 112, 48>}, {pipeline_mode = #tpu.pipeline_mode<synchronous>, transform_indices = @transform_1, window_bounds = array<i64: 48, 128>}, {pipeline_mode = #tpu.pipeline_mode<synchronous>, transform_indices = @transform_2, window_bounds = array<i64: 5, 128>}, {pipeline_mode = #tpu.pipeline_mode<synchronous>, transform_indices = @transform_3, window_bounds = array<i64: 2, 128, 128>}, {transform_indices = @transform_4, window_bounds = array<i64: 112, 16>}]} {
    %c0 = arith.constant 0 : index
    %c0_0 = arith.constant 0 : index
    %0 = vector.load %arg3[%c0, %c0_0] : memref<5x128xf32, #tpu.memory_space<vmem>>, vector<5x128xf32>
    %c0_1 = arith.constant 0 : index
    %c0_2 = arith.constant 0 : index
    %1 = vector.load %arg1[%c0_1, %c0_2] : memref<112x48xbf16, #tpu.memory_space<vmem>>, vector<112x48xbf16>
    %c0_3 = arith.constant 0 : index
    %c0_4 = arith.constant 0 : index
    %2 = vector.load %arg2[%c0_3, %c0_4] : memref<48x128xbf16, #tpu.memory_space<vmem>>, vector<48x128xbf16>
    %cst = arith.constant dense<0.000000e+00> : vector<112x128xf32>
    %3 = tpu.matmul %1, %2, %cst {dimension_numbers = #tpu.dot_dimension_numbers<[1], [0], [0], [1], [0, 0, 1, 1], [], []>} : vector<112x48xbf16>, vector<48x128xbf16>, vector<112x128xf32> -> vector<112x128xf32>
    %4 = vector.extract_strided_slice %0 {offsets = [0, 0], sizes = [1, 128], strides = [1, 1]} : vector<5x128xf32> to vector<1x128xf32>
    %5 = vector.broadcast %4 : vector<1x128xf32> to vector<112x128xf32>
    %6 = arith.addf %3, %5 : vector<112x128xf32>
    %cst_5 = arith.constant 0.000000e+00 : f32
    %7 = vector.broadcast %cst_5 : f32 to vector<112x128xf32>
    %8 = arith.maximumf %6, %7 : vector<112x128xf32>
    %9 = arith.truncf %8 : vector<112x128xf32> to vector<112x128xbf16>
    %c0_6 = arith.constant 0 : index
    %c0_7 = arith.constant 0 : index
    %c0_8 = arith.constant 0 : index
    %10 = vector.load %arg4[%c0_6, %c0_7, %c0_8] : memref<2x128x128xbf16, #tpu.memory_space<vmem>>, vector<1x128x128xbf16>
    %11 = vector.shape_cast %10 : vector<1x128x128xbf16> to vector<128x128xbf16>
    %cst_9 = arith.constant dense<0.000000e+00> : vector<112x128xf32>
    %12 = tpu.matmul %9, %11, %cst_9 {dimension_numbers = #tpu.dot_dimension_numbers<[1], [0], [0], [1], [0, 0, 1, 1], [], []>} : vector<112x128xbf16>, vector<128x128xbf16>, vector<112x128xf32> -> vector<112x128xf32>
    %13 = vector.extract_strided_slice %0 {offsets = [1, 0], sizes = [1, 128], strides = [1, 1]} : vector<5x128xf32> to vector<1x128xf32>
    %14 = vector.broadcast %13 : vector<1x128xf32> to vector<112x128xf32>
    %15 = arith.addf %12, %14 : vector<112x128xf32>
    %cst_10 = arith.constant 0.000000e+00 : f32
    %16 = vector.broadcast %cst_10 : f32 to vector<112x128xf32>
    %17 = arith.maximumf %15, %16 : vector<112x128xf32>
    %18 = arith.truncf %17 : vector<112x128xf32> to vector<112x128xbf16>
    %c1 = arith.constant 1 : index
    %c0_11 = arith.constant 0 : index
    %c0_12 = arith.constant 0 : index
    %19 = vector.load %arg4[%c1, %c0_11, %c0_12] : memref<2x128x128xbf16, #tpu.memory_space<vmem>>, vector<1x128x128xbf16>
    %20 = vector.shape_cast %19 : vector<1x128x128xbf16> to vector<128x128xbf16>
    %cst_13 = arith.constant dense<0.000000e+00> : vector<112x128xf32>
    %21 = tpu.matmul %18, %20, %cst_13 {dimension_numbers = #tpu.dot_dimension_numbers<[1], [0], [0], [1], [0, 0, 1, 1], [], []>} : vector<112x128xbf16>, vector<128x128xbf16>, vector<112x128xf32> -> vector<112x128xf32>
    %22 = vector.extract_strided_slice %0 {offsets = [2, 0], sizes = [1, 128], strides = [1, 1]} : vector<5x128xf32> to vector<1x128xf32>
    %23 = vector.broadcast %22 : vector<1x128xf32> to vector<112x128xf32>
    %24 = arith.addf %21, %23 : vector<112x128xf32>
    %cst_14 = arith.constant 0.000000e+00 : f32
    %25 = vector.broadcast %cst_14 : f32 to vector<112x128xf32>
    %26 = arith.maximumf %24, %25 : vector<112x128xf32>
    %27 = vector.extract_strided_slice %0 {offsets = [3, 0], sizes = [1, 128], strides = [1, 1]} : vector<5x128xf32> to vector<1x128xf32>
    %28 = vector.broadcast %27 : vector<1x128xf32> to vector<112x128xf32>
    %29 = arith.mulf %26, %28 : vector<112x128xf32>
    %30 = vector.extract_strided_slice %0 {offsets = [4, 0], sizes = [1, 128], strides = [1, 1]} : vector<5x128xf32> to vector<1x128xf32>
    %31 = vector.broadcast %30 : vector<1x128xf32> to vector<112x128xf32>
    %32 = arith.addf %29, %31 : vector<112x128xf32>
    %33 = vector.extract_strided_slice %32 {offsets = [0, 0], sizes = [112, 16], strides = [1, 1]} : vector<112x128xf32> to vector<112x16xf32>
    %c0_15 = arith.constant 0 : index
    %c0_16 = arith.constant 0 : index
    %34 = vector.load %arg5[%c0_15, %c0_16] : memref<112x16xf32, #tpu.memory_space<vmem>>, vector<112x16xf32>
    tpu.vector_store %arg5[%c0_15, %c0_16], %33 {strides = array<i32>} : memref<112x16xf32, #tpu.memory_space<vmem>>, vector<112x16xf32>,
    return
  }
  func.func @transform_0(%arg0: i32) -> (i32, i32) {
    %c0_i32 = arith.constant 0 : i32
    %c0_i32_0 = arith.constant 0 : i32
    return %arg0, %c0_i32 : i32, i32
  }
  func.func @transform_1(%arg0: i32) -> (i32, i32) {
    %c0_i32 = arith.constant 0 : i32
    %c0_i32_0 = arith.constant 0 : i32
    %c0_i32_1 = arith.constant 0 : i32
    return %c0_i32, %c0_i32_0 : i32, i32
  }
  func.func @transform_2(%arg0: i32) -> (i32, i32) {
    %c0_i32 = arith.constant 0 : i32
    %c0_i32_0 = arith.constant 0 : i32
    %c0_i32_1 = arith.constant 0 : i32
    return %c0_i32, %c0_i32_0 : i32, i32
  }
  func.func @transform_3(%arg0: i32) -> (i32, i32, i32) {
    %c0_i32 = arith.constant 0 : i32
    %c0_i32_0 = arith.constant 0 : i32
    %c0_i32_1 = arith.constant 0 : i32
    %c0_i32_2 = arith.constant 0 : i32
    return %c0_i32, %c0_i32_0, %c0_i32_1 : i32, i32, i32
  }
  func.func @transform_4(%arg0: i32) -> (i32, i32) {
    %c0_i32 = arith.constant 0 : i32
    %c0_i32_0 = arith.constant 0 : i32
    return %arg0, %c0_i32 : i32, i32
  }
}

</mosaic_0001>

<llo_original>
// kernel: conv_encoder_forward.1
$region0: #{conv_encoder_forward.1}
  #allocation0 [shape = 'u32[]', space=smem, size = 0x4, offset = 0x4, fixed_abs, tag = 'smem constant byte address 0x4 - core index']
  #allocation1 [shape = 'u32[144,128]{1,0:T(1,128)}', space=vmem, size = 0x12000, scoped, tag = 'internal scratch']
  %s0 = inlined_call_operand.vmem [shape: bf16[98,48], index: 0, kind: input, shape index: {}]
  %s1 = inlined_call_operand.vmem [shape: bf16[48,128], index: 1, kind: input, shape index: {}]
  %s2 = inlined_call_operand.vmem [shape: f32[5,128], index: 2, kind: input, shape index: {}]
  %s3 = inlined_call_operand.vmem [shape: bf16[2,128,128], index: 3, kind: input, shape index: {}]
  %s4 = inlined_call_operand.vmem [shape: f32[98,16], index: 4, kind: output, shape index: {}]
  %s5 = sld [smem:[#allocation0]]
  $region60: #{conv_encoder_forward.1} parent=0
    _
  %s7 = ssub.s32 1, %s5
  %s8 = scalar_select 0, %s7, %s5
  $region1: #{conv_encoder_forward.1} parent=0
    #allocation2 [shape = 'u8[57344]{0}', space=vmem, size = 0xe000, scoped, tag = 'output window, operand 0, single buffered']
    // Predicated region
    $region2: #{conv_encoder_forward.1} parent=1 // pred_check
      _
    $region3: #{conv_encoder_forward.1} parent=1 // pred_check_branch
      %10 = sbr.rel (0) target = $region5
    $region4: #{conv_encoder_forward.1} parent=1 // pred_region
      _
    $region5: #{conv_encoder_forward.1} parent=1 // pred_fallthru
      _
    // Predicated region
    $region6: #{conv_encoder_forward.1} parent=1 // pred_check
      _
    $region7: #{conv_encoder_forward.1} parent=1 // pred_check_branch
      %12 = sbr.rel (0) target = $region9
    $region8: #{conv_encoder_forward.1} parent=1 // pred_region
      _
    $region9: #{conv_encoder_forward.1} parent=1 // pred_fallthru
      _
    // Predicated region
    $region10: #{conv_encoder_forward.1} parent=1 // pred_check
      _
    $region11: #{conv_encoder_forward.1} parent=1 // pred_check_branch
      %14 = sbr.rel (0) target = $region13
    $region12: #{conv_encoder_forward.1} parent=1 // pred_region
      _
    $region13: #{conv_encoder_forward.1} parent=1 // pred_fallthru
      _
    // Predicated region
    $region14: #{conv_encoder_forward.1} parent=1 // pred_check
      _
    $region15: #{conv_encoder_forward.1} parent=1 // pred_check_branch
      %16 = sbr.rel (0) target = $region17
    $region16: #{conv_encoder_forward.1} parent=1 // pred_region
      _
    $region17: #{conv_encoder_forward.1} parent=1 // pred_fallthru
      _
    %v18 = vld [vmem:[%s2] sm:$0x1f]
    %v19 = vld [vmem:[%s0] sm:$0xf]
    %v20 = vld [vmem:[%s0 + $0x4] sm:$0xf]
    %v21 = vld [vmem:[%s0 + $0x8] sm:$0xf]
    %v22 = vld [vmem:[%s0 + $0xc] sm:$0xf]
    %v23 = vld [vmem:[%s0 + $0x10] sm:$0xf]
    %v24 = vld [vmem:[%s0 + $0x14] sm:$0xf]
    %v25 = vld [vmem:[%s0 + $0x18] sm:$0xf]
    %v26 = vld [vmem:[%s0 + $0x1c] sm:$0xf]
    %v27 = vld [vmem:[%s0 + $0x20] sm:$0xf]
    %v28 = vld [vmem:[%s0 + $0x24] sm:$0xf]
    %v29 = vld [vmem:[%s0 + $0x28] sm:$0xf]
    %v30 = vld [vmem:[%s0 + $0x2c] sm:$0xf]
    %v31 = vld [vmem:[%s0 + $0x30] sm:$0xf]
    %v32 = vld [vmem:[%s0 + $0x34] sm:$0xf]
    %v33 = vld [vmem:[%s1] sm:$0xf]
    %v34 = vld [vmem:[%s1 + $0x4] sm:$0xf]
    %v35 = vld [vmem:[%s1 + $0x8] sm:$0xf]
    %v36 = vld [vmem:[%s1 + $0xc] sm:$0xf]
    %v37 = vld [vmem:[%s1 + $0x10] sm:$0xf]
    %v38 = vld [vmem:[%s1 + $0x14] sm:$0xf]
    %v39 = vlaneseq
    %v40 = vshrl.u32 %v39, 7
    %v41 = vsub.s32 0, %v40
    %v42 = vrot.slane %v18, %v41
    %v57 = vunpack.c.l.b16 %v19
    %v58 = vunpack.c.l.b16 %v20
    %v59 = vunpack.c.l.b16 %v21
    %v60 = vunpack.c.l.b16 %v22
    %v61 = vunpack.c.l.b16 %v23
    %v62 = vunpack.c.l.b16 %v24
    %v63 = vunpack.c.l.b16 %v25
    %v64 = vunpack.c.l.b16 %v26
    %v65 = vunpack.c.l.b16 %v27
    %v66 = vunpack.c.l.b16 %v28
    %v67 = vunpack.c.l.b16 %v29
    %v68 = vunpack.c.l.b16 %v30
    %v69 = vunpack.c.l.b16 %v31
    %v70 = vunpack.c.l.b16 %v32
    %v71 = vpack.c.b16 %v58, %v57
    %v72 = vpack.c.b16 %v60, %v59
    %v73 = vpack.c.b16 %v62, %v61
    %v74 = vpack.c.b16 %v64, %v63
    %v75 = vpack.c.b16 %v66, %v65
    %v76 = vpack.c.b16 %v68, %v67
    %v77 = vpack.c.b16 %v70, %v69
    %v84 = vunpack.c.l.b16 %v33
    %v85 = vunpack.c.l.b16 %v34
    %v86 = vunpack.c.l.b16 %v35
    %v87 = vunpack.c.l.b16 %v36
    %v88 = vunpack.c.l.b16 %v37
    %v89 = vunpack.c.l.b16 %v38
    %v90 = vpack.c.b16 %v85, %v84
    %v91 = vpack.c.b16 %v87, %v86
    %v92 = vpack.c.b16 %v89, %v88
    %vm96 = vcmask 392192
    %v98 = vsel %vm96, %v71, 0
    %v101 = vsel %vm96, %v72, 0
    %v104 = vsel %vm96, %v73, 0
    %v107 = vsel %vm96, %v74, 0
    %v110 = vsel %vm96, %v75, 0
    %v113 = vsel %vm96, %v76, 0
    %v116 = vsel %vm96, %v77, 0
    %118 = vmatprep.subr.bf16.mxu0 0
    %119 = vmatpush1.bf16.msra.mxu0 %v90
    %120 = vmatprep.subr.bf16.mxu0 0
    %121 = vmatpush1.bf16.msra.mxu0 %v91
    %122 = vmatprep.subr.bf16.mxu0 0
    %123 = vmatpush1.bf16.msra.mxu0 %v92
    %124 = vmatprep.subr.bf16.mxu0 0
    %125 = vmatpush1.bf16.msra.mxu0 0
    %126 = vmatprep.subr.bf16.mxu0 0
    %127 = vmatpush1.bf16.msra.mxu0 0
    %128 = vmatprep.subr.bf16.mxu0 0
    %129 = vmatpush1.bf16.msra.mxu0 0
    %130 = vmatprep.subr.bf16.mxu0 0
    %131 = vmatpush1.bf16.msra.mxu0 0
    %132 = vmatprep.subr.bf16.mxu0 0
    %133 = vmatpush1.bf16.msra.mxu0 0
    %134 = vmatprep.subr.bf16.mxu0 0
    %135 = vmatpush1.bf16.msra.mxu0 0
    %136 = vmatprep.subr.bf16.mxu0 0
    %137 = vmatpush1.bf16.msra.mxu0 0
    %138 = vmatprep.subr.bf16.mxu0 0
    %139 = vmatpush1.bf16.msra.mxu0 0
    %140 = vmatprep.subr.bf16.mxu0 0
    %141 = vmatpush1.bf16.msra.mxu0 0
    %142 = vmatprep.subr.bf16.mxu0 0
    %143 = vmatpush1.bf16.msra.mxu0 0
    %144 = vmatprep.subr.bf16.mxu0 0
    %145 = vmatpush1.bf16.msra.mxu0 0
    %146 = vmatprep.subr.bf16.mxu0 0
    %147 = vmatpush1.bf16.msra.mxu0 0
    %148 = vmatprep.subr.bf16.mxu0 0
    %149 = vmatpush1.bf16.msra.mxu0 0
    %150 = vmatprep.mubr.bf16.mxu0 0
    %151 = vmatmul.mubr.bf16.gmra.mrb[0].mxu0 %v98
    %v152 = vpop.f32.mrb[0].mxu0
    %v153 = vadd.f32 %v42, %v152
    %v154 = vpop.f32.mrb[0].mxu0
    %v155 = vpop.f32.mrb[0].mxu0
    %v156 = vadd.f32 %v42, %v155
    %v157 = vpop.f32.mrb[0].mxu0
    %158 = vmatprep.mubr.bf16.mxu0 0
    %159 = vmatmul.mubr.bf16.gmra.mrb[0].mxu0 %v101
    %v160 = vpop.f32.mrb[0].mxu0
    %v161 = vadd.f32 %v42, %v160
    %v162 = vpop.f32.mrb[0].mxu0
    %v163 = vpop.f32.mrb[0].mxu0
    %v164 = vadd.f32 %v42, %v163
    %v165 = vpop.f32.mrb[0].mxu0
    %166 = vmatprep.mubr.bf16.mxu0 0
    %167 = vmatmul.mubr.bf16.gmra.mrb[0].mxu0 %v104
    %v168 = vpop.f32.mrb[0].mxu0
    %v169 = vadd.f32 %v42, %v168
    %v170 = vpop.f32.mrb[0].mxu0
    %v171 = vpop.f32.mrb[0].mxu0
    %v172 = vadd.f32 %v42, %v171
    %v173 = vpop.f32.mrb[0].mxu0
    %174 = vmatprep.mubr.bf16.mxu0 0
    %175 = vmatmul.mubr.bf16.gmra.mrb[0].mxu0 %v107
    %v176 = vpop.f32.mrb[0].mxu0
    %v177 = vadd.f32 %v42, %v176
    %v178 = vpop.f32.mrb[0].mxu0
    %v179 = vpop.f32.mrb[0].mxu0
    %v180 = vadd.f32 %v42, %v179
    %v181 = vpop.f32.mrb[0].mxu0
    %182 = vmatprep.mubr.bf16.mxu0 0
    %183 = vmatmul.mubr.bf16.gmra.mrb[0].mxu0 %v110
    %v184 = vpop.f32.mrb[0].mxu0
    %v185 = vadd.f32 %v42, %v184
    %v186 = vpop.f32.mrb[0].mxu0
    %v187 = vpop.f32.mrb[0].mxu0
    %v188 = vadd.f32 %v42, %v187
    %v189 = vpop.f32.mrb[0].mxu0
    %190 = vmatprep.mubr.bf16.mxu0 0
    %191 = vmatmul.mubr.bf16.gmra.mrb[0].mxu0 %v113
    %v192 = vpop.f32.mrb[0].mxu0
    %v193 = vadd.f32 %v42, %v192
    %v194 = vpop.f32.mrb[0].mxu0
    %v195 = vpop.f32.mrb[0].mxu0
    %v196 = vadd.f32 %v42, %v195
    %v197 = vpop.f32.mrb[0].mxu0
    %198 = vmatprep.mubr.bf16.mxu0 0
    %199 = vmatmul.mubr.bf16.gmra.mrb[0].mxu0 %v116
    %v200 = vpop.f32.mrb[0].mxu0
    %v201 = vadd.f32 %v42, %v200
    %v202 = vpop.f32.mrb[0].mxu0
    %v203 = vpop.f32.mrb[0].mxu0
    %v204 = vadd.f32 %v42, %v203
    %v205 = vpop.f32.mrb[0].mxu0
    %206 = vdwg.mxu0
    %v207 = vmax.f32 %v153, 0.0
    %v208 = vmax.f32 %v156, 0.0
    %v209 = vmax.f32 %v161, 0.0
    %v210 = vmax.f32 %v164, 0.0
    %v211 = vmax.f32 %v169, 0.0
    %v212 = vmax.f32 %v172, 0.0
    %v213 = vmax.f32 %v177, 0.0
    %v214 = vmax.f32 %v180, 0.0
    %v215 = vmax.f32 %v185, 0.0
    %v216 = vmax.f32 %v188, 0.0
    %v217 = vmax.f32 %v193, 0.0
    %v218 = vmax.f32 %v196, 0.0
    %v219 = vmax.f32 %v201, 0.0
    %v220 = vmax.f32 %v204, 0.0
    %v221 = vpack.c.bf16 %v208, %v207
    %v222 = vpack.c.bf16 %v210, %v209
    %v223 = vpack.c.bf16 %v212, %v211
    %v224 = vpack.c.bf16 %v214, %v213
    %v225 = vpack.c.bf16 %v216, %v215
    %v226 = vpack.c.bf16 %v218, %v217
    %v227 = vpack.c.bf16 %v220, %v219
    %v228 = vld [vmem:[%s3] sm:$0xf]
    %v229 = vld [vmem:[%s3 + $0x4] sm:$0xf]
    %v230 = vld [vmem:[%s3 + $0x8] sm:$0xf]
    %v231 = vld [vmem:[%s3 + $0xc] sm:$0xf]
    %v232 = vld [vmem:[%s3 + $0x10] sm:$0xf]
    %v233 = vld [vmem:[%s3 + $0x14] sm:$0xf]
    %v234 = vld [vmem:[%s3 + $0x18] sm:$0xf]
    %v235 = vld [vmem:[%s3 + $0x1c] sm:$0xf]
    %v236 = vld [vmem:[%s3 + $0x20] sm:$0xf]
    %v237 = vld [vmem:[%s3 + $0x24] sm:$0xf]
    %v238 = vld [vmem:[%s3 + $0x28] sm:$0xf]
    %v239 = vld [vmem:[%s3 + $0x2c] sm:$0xf]
    %v240 = vld [vmem:[%s3 + $0x30] sm:$0xf]
    %v241 = vld [vmem:[%s3 + $0x34] sm:$0xf]
    %v242 = vld [vmem:[%s3 + $0x38] sm:$0xf]
    %v243 = vld [vmem:[%s3 + $0x3c] sm:$0xf]
    %v244 = vlaneseq
    %v245 = vshrl.u32 %v244, 7
    %v246 = vsub.s32 1, %v245
    %v247 = vrot.slane %v18, %v246
    %v264 = vunpack.c.l.b16 %v228
    %v265 = vunpack.c.l.b16 %v229
    %v266 = vunpack.c.l.b16 %v230
    %v267 = vunpack.c.l.b16 %v231
    %v268 = vunpack.c.l.b16 %v232
    %v269 = vunpack.c.l.b16 %v233
    %v270 = vunpack.c.l.b16 %v234
    %v271 = vunpack.c.l.b16 %v235
    %v272 = vunpack.c.l.b16 %v236
    %v273 = vunpack.c.l.b16 %v237
    %v274 = vunpack.c.l.b16 %v238
    %v275 = vunpack.c.l.b16 %v239
    %v276 = vunpack.c.l.b16 %v240
    %v277 = vunpack.c.l.b16 %v241
    %v278 = vunpack.c.l.b16 %v242
    %v279 = vunpack.c.l.b16 %v243
    %v280 = vpack.c.b16 %v265, %v264
    %v281 = vpack.c.b16 %v267, %v266
    %v282 = vpack.c.b16 %v269, %v268
    %v283 = vpack.c.b16 %v271, %v270
    %v284 = vpack.c.b16 %v273, %v272
    %v285 = vpack.c.b16 %v275, %v274
    %v286 = vpack.c.b16 %v277, %v276
    %v287 = vpack.c.b16 %v279, %v278
    %296 = vmatprep.subr.bf16.mxu0 0
    %297 = vmatpush1.bf16.msra.mxu0 %v280
    %298 = vmatprep.subr.bf16.mxu0 0
    %299 = vmatpush1.bf16.msra.mxu0 %v281
    %300 = vmatprep.subr.bf16.mxu0 0
    %301 = vmatpush1.bf16.msra.mxu0 %v282
    %302 = vmatprep.subr.bf16.mxu0 0
    %303 = vmatpush1.bf16.msra.mxu0 %v283
    %304 = vmatprep.subr.bf16.mxu0 0
    %305 = vmatpush1.bf16.msra.mxu0 %v284
    %306 = vmatprep.subr.bf16.mxu0 0
    %307 = vmatpush1.bf16.msra.mxu0 %v285
    %308 = vmatprep.subr.bf16.mxu0 0
    %309 = vmatpush1.bf16.msra.mxu0 %v286
    %310 = vmatprep.subr.bf16.mxu0 0
    %311 = vmatpush1.bf16.msra.mxu0 %v287
    %312 = vmatprep.subr.bf16.mxu0 0
    %313 = vmatpush1.bf16.msra.mxu0 0
    %314 = vmatprep.subr.bf16.mxu0 0
    %315 = vmatpush1.bf16.msra.mxu0 0
    %316 = vmatprep.subr.bf16.mxu0 0
    %317 = vmatpush1.bf16.msra.mxu0 0
    %318 = vmatprep.subr.bf16.mxu0 0
    %319 = vmatpush1.bf16.msra.mxu0 0
    %320 = vmatprep.subr.bf16.mxu0 0
    %321 = vmatpush1.bf16.msra.mxu0 0
    %322 = vmatprep.subr.bf16.mxu0 0
    %323 = vmatpush1.bf16.msra.mxu0 0
    %324 = vmatprep.subr.bf16.mxu0 0
    %325 = vmatpush1.bf16.msra.mxu0 0
    %326 = vmatprep.subr.bf16.mxu0 0
    %327 = vmatpush1.bf16.msra.mxu0 0
    %328 = vmatprep.mubr.bf16.mxu0 0
    %329 = vmatmul.mubr.bf16.gmra.mrb[0].mxu0 %v221
    %v330 = vpop.f32.mrb[0].mxu0
    %v331 = vadd.f32 %v247, %v330
    %v332 = vpop.f32.mrb[0].mxu0
    %v333 = vpop.f32.mrb[0].mxu0
    %v334 = vadd.f32 %v247, %v333
    %v335 = vpop.f32.mrb[0].mxu0
    %336 = vmatprep.mubr.bf16.mxu0 0
    %337 = vmatmul.mubr.bf16.gmra.mrb[0].mxu0 %v222
    %v338 = vpop.f32.mrb[0].mxu0
    %v339 = vadd.f32 %v247, %v338
    %v340 = vpop.f32.mrb[0].mxu0
    %v341 = vpop.f32.mrb[0].mxu0
    %v342 = vadd.f32 %v247, %v341
    %v343 = vpop.f32.mrb[0].mxu0
    %344 = vmatprep.mubr.bf16.mxu0 0
    %345 = vmatmul.mubr.bf16.gmra.mrb[0].mxu0 %v223
    %v346 = vpop.f32.mrb[0].mxu0
    %v347 = vadd.f32 %v247, %v346
    %v348 = vpop.f32.mrb[0].mxu0
    %v349 = vpop.f32.mrb[0].mxu0
    %v350 = vadd.f32 %v247, %v349
    %v351 = vpop.f32.mrb[0].mxu0
    %352 = vmatprep.mubr.bf16.mxu0 0
    %353 = vmatmul.mubr.bf16.gmra.mrb[0].mxu0 %v224
    %v354 = vpop.f32.mrb[0].mxu0
    %v355 = vadd.f32 %v247, %v354
    %v356 = vpop.f32.mrb[0].mxu0
    %v357 = vpop.f32.mrb[0].mxu0
    %v358 = vadd.f32 %v247, %v357
    %v359 = vpop.f32.mrb[0].mxu0
    %360 = vmatprep.mubr.bf16.mxu0 0
    %361 = vmatmul.mubr.bf16.gmra.mrb[0].mxu0 %v225
    %v362 = vpop.f32.mrb[0].mxu0
    %v363 = vadd.f32 %v247, %v362
    %v364 = vpop.f32.mrb[0].mxu0
    %v365 = vpop.f32.mrb[0].mxu0
    %v366 = vadd.f32 %v247, %v365
    %v367 = vpop.f32.mrb[0].mxu0
    %368 = vmatprep.mubr.bf16.mxu0 0
    %369 = vmatmul.mubr.bf16.gmra.mrb[0].mxu0 %v226
    %v370 = vpop.f32.mrb[0].mxu0
    %v371 = vadd.f32 %v247, %v370
    %v372 = vpop.f32.mrb[0].mxu0
    %v373 = vpop.f32.mrb[0].mxu0
    %v374 = vadd.f32 %v247, %v373
    %v375 = vpop.f32.mrb[0].mxu0
    %376 = vmatprep.mubr.bf16.mxu0 0
    %377 = vmatmul.mubr.bf16.gmra.mrb[0].mxu0 %v227
    %v378 = vpop.f32.mrb[0].mxu0
    %v379 = vadd.f32 %v247, %v378
    %v380 = vpop.f32.mrb[0].mxu0
    %v381 = vpop.f32.mrb[0].mxu0
    %v382 = vadd.f32 %v247, %v381
    %v383 = vpop.f32.mrb[0].mxu0
    %384 = vdwg.mxu0
    %v385 = vmax.f32 %v331, 0.0
    %v386 = vmax.f32 %v334, 0.0
    %v387 = vmax.f32 %v339, 0.0
    %v388 = vmax.f32 %v342, 0.0
    %v389 = vmax.f32 %v347, 0.0
    %v390 = vmax.f32 %v350, 0.0
    %v391 = vmax.f32 %v355, 0.0
    %v392 = vmax.f32 %v358, 0.0
    %v393 = vmax.f32 %v363, 0.0
    %v394 = vmax.f32 %v366, 0.0
    %v395 = vmax.f32 %v371, 0.0
    %v396 = vmax.f32 %v374, 0.0
    %v397 = vmax.f32 %v379, 0.0
    %v398 = vmax.f32 %v382, 0.0
    %v399 = vpack.c.bf16 %v386, %v385
    %v400 = vpack.c.bf16 %v388, %v387
    %v401 = vpack.c.bf16 %v390, %v389
    %v402 = vpack.c.bf16 %v392, %v391
    %v403 = vpack.c.bf16 %v394, %v393
    %v404 = vpack.c.bf16 %v396, %v395
    %v405 = vpack.c.bf16 %v398, %v397
    %s406 = scalar_lea.vmem %s3, 64
    %v407 = vld [vmem:[%s406] sm:$0xf]
    %v408 = vld [vmem:[%s406 + $0x4] sm:$0xf]
    %v409 = vld [vmem:[%s406 + $0x8] sm:$0xf]
    %v410 = vld [vmem:[%s406 + $0xc] sm:$0xf]
    %v411 = vld [vmem:[%s406 + $0x10] sm:$0xf]
    %v412 = vld [vmem:[%s406 + $0x14] sm:$0xf]
    %v413 = vld [vmem:[%s406 + $0x18] sm:$0xf]
    %v414 = vld [vmem:[%s406 + $0x1c] sm:$0xf]
    %v415 = vld [vmem:[%s406 + $0x20] sm:$0xf]
    %v416 = vld [vmem:[%s406 + $0x24] sm:$0xf]
    %v417 = vld [vmem:[%s406 + $0x28] sm:$0xf]
    %v418 = vld [vmem:[%s406 + $0x2c] sm:$0xf]
    %v419 = vld [vmem:[%s406 + $0x30] sm:$0xf]
    %v420 = vld [vmem:[%s406 + $0x34] sm:$0xf]
    %v421 = vld [vmem:[%s406 + $0x38] sm:$0xf]
    %v422 = vld [vmem:[%s406 + $0x3c] sm:$0xf]
    %v423 = vlaneseq
    %v424 = vshrl.u32 %v423, 7
    %v425 = vsub.s32 2, %v424
    %v426 = vrot.slane %v18, %v425
    %v443 = vunpack.c.l.b16 %v407
    %v444 = vunpack.c.l.b16 %v408
    %v445 = vunpack.c.l.b16 %v409
    %v446 = vunpack.c.l.b16 %v410
    %v447 = vunpack.c.l.b16 %v411
    %v448 = vunpack.c.l.b16 %v412
    %v449 = vunpack.c.l.b16 %v413
    %v450 = vunpack.c.l.b16 %v414
    %v451 = vunpack.c.l.b16 %v415
    %v452 = vunpack.c.l.b16 %v416
    %v453 = vunpack.c.l.b16 %v417
    %v454 = vunpack.c.l.b16 %v418
    %v455 = vunpack.c.l.b16 %v419
    %v456 = vunpack.c.l.b16 %v420
    %v457 = vunpack.c.l.b16 %v421
    %v458 = vunpack.c.l.b16 %v422
    %v459 = vpack.c.b16 %v444, %v443
    %v460 = vpack.c.b16 %v446, %v445
    %v461 = vpack.c.b16 %v448, %v447
    %v462 = vpack.c.b16 %v450, %v449
    %v463 = vpack.c.b16 %v452, %v451
    %v464 = vpack.c.b16 %v454, %v453
    %v465 = vpack.c.b16 %v456, %v455
    %v466 = vpack.c.b16 %v458, %v457
    %475 = vmatprep.subr.bf16.mxu0 0
    %476 = vmatpush1.bf16.msra.mxu0 %v459
    %477 = vmatprep.subr.bf16.mxu0 0
    %478 = vmatpush1.bf16.msra.mxu0 %v460
    %479 = vmatprep.subr.bf16.mxu0 0
    %480 = vmatpush1.bf16.msra.mxu0 %v461
    %481 = vmatprep.subr.bf16.mxu0 0
    %482 = vmatpush1.bf16.msra.mxu0 %v462
    %483 = vmatprep.subr.bf16.mxu0 0
    %484 = vmatpush1.bf16.msra.mxu0 %v463
    %485 = vmatprep.subr.bf16.mxu0 0
    %486 = vmatpush1.bf16.msra.mxu0 %v464
    %487 = vmatprep.subr.bf16.mxu0 0
    %488 = vmatpush1.bf16.msra.mxu0 %v465
    %489 = vmatprep.subr.bf16.mxu0 0
    %490 = vmatpush1.bf16.msra.mxu0 %v466
    %491 = vmatprep.subr.bf16.mxu0 0
    %492 = vmatpush1.bf16.msra.mxu0 0
    %493 = vmatprep.subr.bf16.mxu0 0
    %494 = vmatpush1.bf16.msra.mxu0 0
    %495 = vmatprep.subr.bf16.mxu0 0
    %496 = vmatpush1.bf16.msra.mxu0 0
    %497 = vmatprep.subr.bf16.mxu0 0
    %498 = vmatpush1.bf16.msra.mxu0 0
    %499 = vmatprep.subr.bf16.mxu0 0
    %500 = vmatpush1.bf16.msra.mxu0 0
    %501 = vmatprep.subr.bf16.mxu0 0
    %502 = vmatpush1.bf16.msra.mxu0 0
    %503 = vmatprep.subr.bf16.mxu0 0
    %504 = vmatpush1.bf16.msra.mxu0 0
    %505 = vmatprep.subr.bf16.mxu0 0
    %506 = vmatpush1.bf16.msra.mxu0 0
    %507 = vmatprep.mubr.bf16.mxu0 0
    %508 = vmatmul.mubr.bf16.gmra.mrb[0].mxu0 %v399
    %v509 = vpop.f32.mrb[0].mxu0
    %v510 = vadd.f32 %v426, %v509
    %v511 = vpop.f32.mrb[0].mxu0
    %v512 = vpop.f32.mrb[0].mxu0
    %v513 = vadd.f32 %v426, %v512
    %v514 = vpop.f32.mrb[0].mxu0
    %515 = vmatprep.mubr.bf16.mxu0 0
    %516 = vmatmul.mubr.bf16.gmra.mrb[0].mxu0 %v400
    %v517 = vpop.f32.mrb[0].mxu0
    %v518 = vadd.f32 %v426, %v517
    %v519 = vpop.f32.mrb[0].mxu0
    %v520 = vpop.f32.mrb[0].mxu0
    %v521 = vadd.f32 %v426, %v520
    %v522 = vpop.f32.mrb[0].mxu0
    %523 = vmatprep.mubr.bf16.mxu0 0
    %524 = vmatmul.mubr.bf16.gmra.mrb[0].mxu0 %v401
    %v525 = vpop.f32.mrb[0].mxu0
    %v526 = vadd.f32 %v426, %v525
    %v527 = vpop.f32.mrb[0].mxu0
    %v528 = vpop.f32.mrb[0].mxu0
    %v529 = vadd.f32 %v426, %v528
    %v530 = vpop.f32.mrb[0].mxu0
    %531 = vmatprep.mubr.bf16.mxu0 0
    %532 = vmatmul.mubr.bf16.gmra.mrb[0].mxu0 %v402
    %v533 = vpop.f32.mrb[0].mxu0
    %v534 = vadd.f32 %v426, %v533
    %v535 = vpop.f32.mrb[0].mxu0
    %v536 = vpop.f32.mrb[0].mxu0
    %v537 = vadd.f32 %v426, %v536
    %v538 = vpop.f32.mrb[0].mxu0
    %539 = vmatprep.mubr.bf16.mxu0 0
    %540 = vmatmul.mubr.bf16.gmra.mrb[0].mxu0 %v403
    %v541 = vpop.f32.mrb[0].mxu0
    %v542 = vadd.f32 %v426, %v541
    %v543 = vpop.f32.mrb[0].mxu0
    %v544 = vpop.f32.mrb[0].mxu0
    %v545 = vadd.f32 %v426, %v544
    %v546 = vpop.f32.mrb[0].mxu0
    %547 = vmatprep.mubr.bf16.mxu0 0
    %548 = vmatmul.mubr.bf16.gmra.mrb[0].mxu0 %v404
    %v549 = vpop.f32.mrb[0].mxu0
    %v550 = vadd.f32 %v426, %v549
    %v551 = vpop.f32.mrb[0].mxu0
    %v552 = vpop.f32.mrb[0].mxu0
    %v553 = vadd.f32 %v426, %v552
    %v554 = vpop.f32.mrb[0].mxu0
    %555 = vmatprep.mubr.bf16.mxu0 0
    %556 = vmatmul.mubr.bf16.gmra.mrb[0].mxu0 %v405
    %v557 = vpop.f32.mrb[0].mxu0
    %v558 = vadd.f32 %v426, %v557
    %v559 = vpop.f32.mrb[0].mxu0
    %v560 = vpop.f32.mrb[0].mxu0
    %v561 = vadd.f32 %v426, %v560
    %v562 = vpop.f32.mrb[0].mxu0
    %563 = vdwg.mxu0
    %v564 = vmax.f32 %v510, 0.0
    %v565 = vmax.f32 %v513, 0.0
    %v566 = vmax.f32 %v518, 0.0
    %v567 = vmax.f32 %v521, 0.0
    %v568 = vmax.f32 %v526, 0.0
    %v569 = vmax.f32 %v529, 0.0
    %v570 = vmax.f32 %v534, 0.0
    %v571 = vmax.f32 %v537, 0.0
    %v572 = vmax.f32 %v542, 0.0
    %v573 = vmax.f32 %v545, 0.0
    %v574 = vmax.f32 %v550, 0.0
    %v575 = vmax.f32 %v553, 0.0
    %v576 = vmax.f32 %v558, 0.0
    %v577 = vmax.f32 %v561, 0.0
    %v578 = vlaneseq
    %v579 = vshrl.u32 %v578, 7
    %v580 = vsub.s32 3, %v579
    %v581 = vrot.slane %v18, %v580
    %v582 = vmul.f32 %v564, %v581
    %v583 = vmul.f32 %v565, %v581
    %v584 = vmul.f32 %v566, %v581
    %v585 = vmul.f32 %v567, %v581
    %v586 = vmul.f32 %v568, %v581
    %v587 = vmul.f32 %v569, %v581
    %v588 = vmul.f32 %v570, %v581
    %v589 = vmul.f32 %v571, %v581
    %v590 = vmul.f32 %v572, %v581
    %v591 = vmul.f32 %v573, %v581
    %v592 = vmul.f32 %v574, %v581
    %v593 = vmul.f32 %v575, %v581
    %v594 = vmul.f32 %v576, %v581
    %v595 = vmul.f32 %v577, %v581
    %v596 = vlaneseq
    %v597 = vshrl.u32 %v596, 7
    %v598 = vsub.s32 4, %v597
    %v599 = vrot.slane %v18, %v598
    %v600 = vadd.f32 %v582, %v599
    %v601 = vadd.f32 %v583, %v599
    %v602 = vadd.f32 %v584, %v599
    %v603 = vadd.f32 %v585, %v599
    %v604 = vadd.f32 %v586, %v599
    %v605 = vadd.f32 %v587, %v599
    %v606 = vadd.f32 %v588, %v599
    %v607 = vadd.f32 %v589, %v599
    %v608 = vadd.f32 %v590, %v599
    %v609 = vadd.f32 %v591, %v599
    %v610 = vadd.f32 %v592, %v599
    %v611 = vadd.f32 %v593, %v599
    %v612 = vadd.f32 %v594, %v599
    %v613 = vadd.f32 %v595, %v599
    %vm614 = vcmask 130048
    %615 = vst.msk [vmem:[#allocation2] sm:$0xff] %vm614, %v600
    %616 = vst.msk [vmem:[#allocation2 + $0x8] sm:$0xff] %vm614, %v601
    %617 = vst.msk [vmem:[#allocation2 + $0x10] sm:$0xff] %vm614, %v602
    %618 = vst.msk [vmem:[#allocation2 + $0x18] sm:$0xff] %vm614, %v603
    %619 = vst.msk [vmem:[#allocation2 + $0x20] sm:$0xff] %vm614, %v604
    %620 = vst.msk [vmem:[#allocation2 + $0x28] sm:$0xff] %vm614, %v605
    %621 = vst.msk [vmem:[#allocation2 + $0x30] sm:$0xff] %vm614, %v606
    %622 = vst.msk [vmem:[#allocation2 + $0x38] sm:$0xff] %vm614, %v607
    %623 = vst.msk [vmem:[#allocation2 + $0x40] sm:$0xff] %vm614, %v608
    %624 = vst.msk [vmem:[#allocation2 + $0x48] sm:$0xff] %vm614, %v609
    %625 = vst.msk [vmem:[#allocation2 + $0x50] sm:$0xff] %vm614, %v610
    %626 = vst.msk [vmem:[#allocation2 + $0x58] sm:$0xff] %vm614, %v611
    %627 = vst.msk [vmem:[#allocation2 + $0x60] sm:$0xff] %vm614, %v612
    %628 = vst.msk [vmem:[#allocation2 + $0x68] sm:$0xff] %vm614, %v613
    // Predicated region
    $region18: #{conv_encoder_forward.1} parent=1 // pred_check
      _
    $region19: #{conv_encoder_forward.1} parent=1 // pred_check_branch
      %630 = sbr.rel (0) target = $region21
    $region20: #{conv_encoder_forward.1} parent=1 // pred_region
      // Predicated region
      $region22: #{conv_encoder_forward.1} parent=20 // pred_check
        _
      $region23: #{conv_encoder_forward.1} parent=20 // pred_check_branch
        %632 = sbr.rel (0) target = $region25
      $region24: #{conv_encoder_forward.1} parent=20 // pred_region
        // Predicated region
        $region26: #{conv_encoder_forward.1} parent=24 // pred_check
          _
        $region27: #{conv_encoder_forward.1} parent=24 // pred_check_branch
          %634 = sbr.rel (0) target = $region29
        $region28: #{conv_encoder_forward.1} parent=24 // pred_region
          // Predicated region
          $region41: #{conv_encoder_forward.1} parent=28 // pred_check
            _
          $region42: #{conv_encoder_forward.1} parent=28 // pred_check_branch
            %673 = sbr.rel (0) target = $region44
          $region43: #{conv_encoder_forward.1} parent=28 // pred_region
            loop: start=0, step=1, limit=1
            $region45: #{conv_encoder_forward.1} parent=43 // loop_pre_header
              _
            $region46: #{conv_encoder_forward.1} parent=43 // loop_header
              %s675 = sphi 0, %s679
              %p676 = scmp.ge.s32.totalorder %s675, 1
              %s680 = sphi [#allocation2], [#allocation2]
              %s681 = sphi %s4, %s4
            $region47: #{conv_encoder_forward.1} parent=43 // loop_header_branch
              %678 = sbr.rel (%p676) target = $region51
            $region48: #{conv_encoder_forward.1} parent=43 // loop_body
              %v682 = vld [vmem:[%s680] sm:$0xff]
              %683 = vst [vmem:[%s681] sm:$0xff] %v682
              %v684 = vld [vmem:[%s680 + $0x8] sm:$0xff]
              %685 = vst [vmem:[%s681 + $0x8] sm:$0xff] %v684
              %v686 = vld [vmem:[%s680 + $0x10] sm:$0xff]
              %687 = vst [vmem:[%s681 + $0x10] sm:$0xff] %v686
              %v688 = vld [vmem:[%s680 + $0x18] sm:$0xff]
              %689 = vst [vmem:[%s681 + $0x18] sm:$0xff] %v688
              %v690 = vld [vmem:[%s680 + $0x20] sm:$0xff]
              %691 = vst [vmem:[%s681 + $0x20] sm:$0xff] %v690
              %v692 = vld [vmem:[%s680 + $0x28] sm:$0xff]
              %693 = vst [vmem:[%s681 + $0x28] sm:$0xff] %v692
              %v694 = vld [vmem:[%s680 + $0x30] sm:$0xff]
              %695 = vst [vmem:[%s681 + $0x30] sm:$0xff] %v694
              %v696 = vld [vmem:[%s680 + $0x38] sm:$0xff]
              %697 = vst [vmem:[%s681 + $0x38] sm:$0xff] %v696
              %v698 = vld [vmem:[%s680 + $0x40] sm:$0xff]
              %699 = vst [vmem:[%s681 + $0x40] sm:$0xff] %v698
              %v700 = vld [vmem:[%s680 + $0x48] sm:$0xff]
              %701 = vst [vmem:[%s681 + $0x48] sm:$0xff] %v700
              %v702 = vld [vmem:[%s680 + $0x50] sm:$0xff]
              %703 = vst [vmem:[%s681 + $0x50] sm:$0xff] %v702
              %v704 = vld [vmem:[%s680 + $0x58] sm:$0xff]
              %705 = vst [vmem:[%s681 + $0x58] sm:$0xff] %v704
              %v706 = vld [vmem:[%s680 + $0x60] sm:$0xff]
              %707 = vst [vmem:[%s681 + $0x60] sm:$0xff] %v706
            $region49: #{conv_encoder_forward.1} parent=43 // loop_footer
              %s679 = sadd.s32 1, %s675
            $region50: #{conv_encoder_forward.1} parent=43 // loop_footer_branch
              %674 = sbr.rel target = $region46
            $region51: #{conv_encoder_forward.1} parent=43 // loop_exit
              _
          $region44: #{conv_encoder_forward.1} parent=28 // pred_fallthru
            _
          // Predicated region
          $region52: #{conv_encoder_forward.1} parent=28 // pred_check
            _
          $region53: #{conv_encoder_forward.1} parent=28 // pred_check_branch
            %709 = sbr.rel target = $region55
          $region54: #{conv_encoder_forward.1} parent=28 // pred_region
            _
          $region55: #{conv_encoder_forward.1} parent=28 // pred_fallthru
            _
        $region29: #{conv_encoder_forward.1} parent=24 // pred_fallthru
          _
        // Predicated region
        $region30: #{conv_encoder_forward.1} parent=24 // pred_check
          _
        $region31: #{conv_encoder_forward.1} parent=24 // pred_check_branch
          %636 = sbr.rel target = $region33
        $region32: #{conv_encoder_forward.1} parent=24 // pred_region
          loop: start=0, step=1, limit=1
          $region34: #{conv_encoder_forward.1} parent=32 // loop_pre_header
            _
          $region35: #{conv_encoder_forward.1} parent=32 // loop_header
            %s639 = sphi 0, %s643
            %p640 = scmp.ge.s32.totalorder %s639, 1
            %s644 = sphi [#allocation2], [#allocation2]
            %s645 = sphi %s4, %s4
          $region36: #{conv_encoder_forward.1} parent=32 // loop_header_branch
            %642 = sbr.rel (%p640) target = $region40
          $region37: #{conv_encoder_forward.1} parent=32 // loop_body
            %v646 = vld [vmem:[%s644] sm:$0xff]
            %647 = vst [vmem:[%s645] sm:$0xff] %v646
            %v648 = vld [vmem:[%s644 + $0x8] sm:$0xff]
            %649 = vst [vmem:[%s645 + $0x8] sm:$0xff] %v648
            %v650 = vld [vmem:[%s644 + $0x10] sm:$0xff]
            %651 = vst [vmem:[%s645 + $0x10] sm:$0xff] %v650
            %v652 = vld [vmem:[%s644 + $0x18] sm:$0xff]
            %653 = vst [vmem:[%s645 + $0x18] sm:$0xff] %v652
            %v654 = vld [vmem:[%s644 + $0x20] sm:$0xff]
            %655 = vst [vmem:[%s645 + $0x20] sm:$0xff] %v654
            %v656 = vld [vmem:[%s644 + $0x28] sm:$0xff]
            %657 = vst [vmem:[%s645 + $0x28] sm:$0xff] %v656
            %v658 = vld [vmem:[%s644 + $0x30] sm:$0xff]
            %659 = vst [vmem:[%s645 + $0x30] sm:$0xff] %v658
            %v660 = vld [vmem:[%s644 + $0x38] sm:$0xff]
            %661 = vst [vmem:[%s645 + $0x38] sm:$0xff] %v660
            %v662 = vld [vmem:[%s644 + $0x40] sm:$0xff]
            %663 = vst [vmem:[%s645 + $0x40] sm:$0xff] %v662
            %v664 = vld [vmem:[%s644 + $0x48] sm:$0xff]
            %665 = vst [vmem:[%s645 + $0x48] sm:$0xff] %v664
            %v666 = vld [vmem:[%s644 + $0x50] sm:$0xff]
            %667 = vst [vmem:[%s645 + $0x50] sm:$0xff] %v666
            %v668 = vld [vmem:[%s644 + $0x58] sm:$0xff]
            %669 = vst [vmem:[%s645 + $0x58] sm:$0xff] %v668
            %v670 = vld [vmem:[%s644 + $0x60] sm:$0xff]
            %671 = vst [vmem:[%s645 + $0x60] sm:$0xff] %v670
          $region38: #{conv_encoder_forward.1} parent=32 // loop_footer
            %s643 = sadd.s32 1, %s639
          $region39: #{conv_encoder_forward.1} parent=32 // loop_footer_branch
            %638 = sbr.rel target = $region35
          $region40: #{conv_encoder_forward.1} parent=32 // loop_exit
            _
        $region33: #{conv_encoder_forward.1} parent=24 // pred_fallthru
          _
      $region25: #{conv_encoder_forward.1} parent=20 // pred_fallthru
        _
      %710 = vnop
    $region21: #{conv_encoder_forward.1} parent=1 // pred_fallthru
      _
    // Predicated region
    $region56: #{conv_encoder_forward.1} parent=1 // pred_check
      _
    $region57: #{conv_encoder_forward.1} parent=1 // pred_check_branch
      %712 = sbr.rel (0) target = $region59
    $region58: #{conv_encoder_forward.1} parent=1 // pred_region
      _
    $region59: #{conv_encoder_forward.1} parent=1 // pred_fallthru
      _

</llo_original>
